<compile_context>
chip_gen: v7x
topology: tpu7x:2x2x1
jax: 0.10.0
libtpu: 0.0.40
codegen_flags: <defaults>
</compile_context>

<pallas_src>
import jax
import jax.numpy as jnp
from jax.experimental import pallas as pl
from jax.experimental.pallas import tpu as pltpu

# Architecture constants (mirrors the PyTorch script)
SLIDING = [2, 2]
INPUT_DIM = SLIDING[0]       # 2
LAYERS_LIST = [100, 200]
OUTPUT_DIM = SLIDING[1]      # 2

# Padded widths
H1_PAD = 128                 # 100 -> 128 (lane-dense hidden)
H2_PAD = 256                 # 200 -> 256 (lane-dense hidden)
OUT_PAD = 8                  # 2   -> 8   (narrow output; block dim == array dim)

TB_MAX = 2048                # max batch-tile rows
SPLIT_THRESHOLD = 1024       # once padded batch reaches this, use >= 2 grid steps
                             # so v7x megacore gets both TensorCores busy


def _round_up(n, m):
    return ((n + m - 1) // m) * m


def _choose_tile(batch):
    """Return (tb, padded_batch). tb is 8-aligned; grid = padded_batch // tb."""
    padded = _round_up(max(batch, 8), 8)
    if padded < SPLIT_THRESHOLD:
        return padded, padded                       # single small tile
    tb = min(TB_MAX, _round_up((padded + 1) // 2, 8))
    padded = _round_up(padded, tb)
    return tb, padded


def dnn_kernel(x_ref, w1_ref, b1_ref, w2_ref, b2_ref, w3_ref, b3_ref, o_ref):
    """Fused MLP forward on one (TB, INPUT_DIM) batch tile."""
    x = x_ref[...]                                   # (TB, 2) f32

    # ---- Layer 1: Linear(2 -> 128pad) + ReLU on the VPU (K=2 -> 2 FMAs) ----
    h1 = (x[:, 0:1] * w1_ref[0:1, :]
          + x[:, 1:2] * w1_ref[1:2, :]
          + b1_ref[...])                             # (TB, 128) f32
    h1 = jnp.maximum(h1, 0.0)

    # ---- Layer 2: Linear(128pad -> 256pad) + ReLU, bf16 MXU / f32 accum ----
    h2 = jnp.dot(h1.astype(jnp.bfloat16), w2_ref[...],
                 preferred_element_type=jnp.float32) + b2_ref[...]
    h2 = jnp.maximum(h2, 0.0)                        # (TB, 256) f32

    # ---- Layer 3: Linear(256pad -> 8pad), bf16 MXU / f32 accum ----
    out = jnp.dot(h2.astype(jnp.bfloat16), w3_ref[...],
                  preferred_element_type=jnp.float32) + b3_ref[...]

    o_ref[...] = out.astype(o_ref.dtype)             # (TB, 8) narrow store


def dnn_forward(x, padded_params):
    """x: (batch, INPUT_DIM) f32 -> (batch, OUTPUT_DIM) f32."""
    batch = x.shape[0]
    tb, padded_batch = _choose_tile(batch)

    if padded_batch != batch:
        x = jnp.pad(x, ((0, padded_batch - batch), (0, 0)))

    p = padded_params
    grid = (padded_batch // tb,)

    # Constant index_maps keep the (tiny) weights VMEM-resident across steps.
    const2d = lambda i: (0, 0)
    weight_specs = [
        pl.BlockSpec((INPUT_DIM, H1_PAD), const2d),   # w1 (f32)
        pl.BlockSpec((1, H1_PAD), const2d),           # b1 (f32)
        pl.BlockSpec((H1_PAD, H2_PAD), const2d),      # w2 (bf16)
        pl.BlockSpec((1, H2_PAD), const2d),           # b2 (f32)
        pl.BlockSpec((H2_PAD, OUT_PAD), const2d),     # w3 (bf16)
        pl.BlockSpec((1, OUT_PAD), const2d),          # b3 (f32)
    ]

    flops = 2 * padded_batch * (INPUT_DIM * H1_PAD + H1_PAD * H2_PAD
                                + H2_PAD * OUT_PAD)
    weight_bytes = (4 * (INPUT_DIM * H1_PAD + H1_PAD + H2_PAD + OUT_PAD)
                    + 2 * (H1_PAD * H2_PAD + H2_PAD * OUT_PAD))
    bytes_accessed = 4 * padded_batch * (INPUT_DIM + OUT_PAD) + weight_bytes

    out_padded = pl.pallas_call(
        dnn_kernel,
        out_shape=jax.ShapeDtypeStruct((padded_batch, OUT_PAD), jnp.float32),
        grid=grid,
        in_specs=[pl.BlockSpec((tb, INPUT_DIM), lambda i: (i, 0))] + weight_specs,
        out_specs=pl.BlockSpec((tb, OUT_PAD), lambda i: (i, 0)),
        compiler_params=pltpu.CompilerParams(
            dimension_semantics=("parallel",),        # megacore on v7x
            vmem_limit_bytes=32 * 1024 * 1024),       # headroom for TB=2048 on v5e
        cost_estimate=pl.CostEstimate(
            flops=flops, transcendentals=0, bytes_accessed=bytes_accessed),
    )(x, p["w1"], p["b1"], p["w2"], p["b2"], p["w3"], p["b3"])

    return out_padded[:batch, :OUTPUT_DIM]


def init_params(key):
    """Unpadded f32 params matching PyTorch Linear init; weights stored (in, out)."""
    dims = [INPUT_DIM] + LAYERS_LIST + [OUTPUT_DIM]   # [2, 100, 200, 2]
    params = {}
    keys = jax.random.split(key, 2 * (len(dims) - 1))
    for i in range(len(dims) - 1):
        fan_in, fan_out = dims[i], dims[i + 1]
        bound = 1.0 / jnp.sqrt(jnp.float32(fan_in))   # PyTorch default uniform bound
        params[f"w{i + 1}"] = jax.random.uniform(
            keys[2 * i], (fan_in, fan_out), minval=-bound, maxval=bound,
            dtype=jnp.float32)
        params[f"b{i + 1}"] = jax.random.uniform(
            keys[2 * i + 1], (1, fan_out), minval=-bound, maxval=bound,
            dtype=jnp.float32)
    return params


def pad_params(params):
    """Zero-pad to kernel layout; cast the MXU weights (w2, w3) to bf16."""
    def pad2(a, rows, cols, dtype=jnp.float32):
        a = jnp.pad(a, ((0, rows - a.shape[0]), (0, cols - a.shape[1])))
        return a.astype(dtype)

    return {
        "w1": pad2(params["w1"], INPUT_DIM, H1_PAD),
        "b1": pad2(params["b1"], 1, H1_PAD),
        "w2": pad2(params["w2"], H1_PAD, H2_PAD, jnp.bfloat16),
        "b2": pad2(params["b2"], 1, H2_PAD),
        "w3": pad2(params["w3"], H2_PAD, OUT_PAD, jnp.bfloat16),
        "b3": pad2(params["b3"], 1, OUT_PAD),
    }


def reference_forward(x, params):
    """Pure-JAX f32 reference (unpadded) for correctness check."""
    h = jnp.maximum(x @ params["w1"] + params["b1"], 0.0)
    h = jnp.maximum(h @ params["w2"] + params["b2"], 0.0)
    return h @ params["w3"] + params["b3"]


if __name__ == "__main__":
    key = jax.random.PRNGKey(0)
    pkey, xkey, xkey2 = jax.random.split(key, 3)

    params = init_params(pkey)
    padded = pad_params(params)

    # Small deterministic check (single tile path).
    batch = 8
    x = jax.random.normal(xkey, (batch, INPUT_DIM), dtype=jnp.float32)
    out = jax.block_until_ready(dnn_forward(x, padded))
    ref = reference_forward(x, params)
    assert out.shape == (batch, OUTPUT_DIM), out.shape
    # bf16 matmul operands (f32 accumulation) -> loosened tolerance vs f32 ref.
    assert jnp.allclose(out, ref, atol=2e-2, rtol=2e-2), "mismatch vs reference (batch=8)"

    # Non-multiple-of-8 batch exercises the pad/slice path.
    batch2 = 13
    x2 = jax.random.normal(xkey2, (batch2, INPUT_DIM), dtype=jnp.float32)
    out2 = jax.block_until_ready(dnn_forward(x2, padded))
    ref2 = reference_forward(x2, params)
    assert out2.shape == (batch2, OUTPUT_DIM), out2.shape
    assert jnp.allclose(out2, ref2, atol=2e-2, rtol=2e-2), "mismatch vs reference (batch=13)"

    print("KERNEL_OK")
</pallas_src>

<mosaic_0001>
module attributes {stable_mosaic.version = 11 : i64} {
  func.func @dnn_kernel(%arg0: i32, %arg1: memref<8x2xf32, #tpu.memory_space<vmem>>, %arg2: memref<2x128xf32, #tpu.memory_space<vmem>>, %arg3: memref<1x128xf32, #tpu.memory_space<vmem>>, %arg4: memref<128x256xbf16, #tpu.memory_space<vmem>>, %arg5: memref<1x256xf32, #tpu.memory_space<vmem>>, %arg6: memref<256x8xbf16, #tpu.memory_space<vmem>>, %arg7: memref<1x8xf32, #tpu.memory_space<vmem>>, %arg8: memref<8x8xf32, #tpu.memory_space<vmem>>) attributes {dimension_semantics = [#tpu.dimension_semantics<parallel>], iteration_bounds = array<i64: 1>, scalar_prefetch = 0 : i64, scratch_operands = 0 : i64, tpu.core_type = #tpu.core_type<tc>, window_params = [{transform_indices = @transform_0, window_bounds = array<i64: 8, 2>}, {pipeline_mode = #tpu.pipeline_mode<synchronous>, transform_indices = @transform_1, window_bounds = array<i64: 2, 128>}, {pipeline_mode = #tpu.pipeline_mode<synchronous>, transform_indices = @transform_2, window_bounds = array<i64: 1, 128>}, {pipeline_mode = #tpu.pipeline_mode<synchronous>, transform_indices = @transform_3, window_bounds = array<i64: 128, 256>}, {pipeline_mode = #tpu.pipeline_mode<synchronous>, transform_indices = @transform_4, window_bounds = array<i64: 1, 256>}, {pipeline_mode = #tpu.pipeline_mode<synchronous>, transform_indices = @transform_5, window_bounds = array<i64: 256, 8>}, {pipeline_mode = #tpu.pipeline_mode<synchronous>, transform_indices = @transform_6, window_bounds = array<i64: 1, 8>}, {transform_indices = @transform_7, window_bounds = array<i64: 8, 8>}]} {
    %c0 = arith.constant 0 : index
    %c0_0 = arith.constant 0 : index
    %0 = vector.load %arg1[%c0, %c0_0] : memref<8x2xf32, #tpu.memory_space<vmem>>, vector<8x2xf32>
    %1 = vector.extract_strided_slice %0 {offsets = [0, 0], sizes = [8, 1], strides = [1, 1]} : vector<8x2xf32> to vector<8x1xf32>
    %c0_1 = arith.constant 0 : index
    %c0_2 = arith.constant 0 : index
    %2 = vector.load %arg2[%c0_1, %c0_2] : memref<2x128xf32, #tpu.memory_space<vmem>>, vector<1x128xf32>
    %3 = vector.broadcast %1 : vector<8x1xf32> to vector<8x128xf32>
    %4 = vector.broadcast %2 : vector<1x128xf32> to vector<8x128xf32>
    %5 = arith.mulf %3, %4 : vector<8x128xf32>
    %6 = vector.extract_strided_slice %0 {offsets = [0, 1], sizes = [8, 1], strides = [1, 1]} : vector<8x2xf32> to vector<8x1xf32>
    %c1 = arith.constant 1 : index
    %c0_3 = arith.constant 0 : index
    %7 = vector.load %arg2[%c1, %c0_3] : memref<2x128xf32, #tpu.memory_space<vmem>>, vector<1x128xf32>
    %8 = vector.broadcast %6 : vector<8x1xf32> to vector<8x128xf32>
    %9 = vector.broadcast %7 : vector<1x128xf32> to vector<8x128xf32>
    %10 = arith.mulf %8, %9 : vector<8x128xf32>
    %11 = arith.addf %5, %10 : vector<8x128xf32>
    %c0_4 = arith.constant 0 : index
    %c0_5 = arith.constant 0 : index
    %12 = vector.load %arg3[%c0_4, %c0_5] : memref<1x128xf32, #tpu.memory_space<vmem>>, vector<1x128xf32>
    %13 = vector.broadcast %12 : vector<1x128xf32> to vector<8x128xf32>
    %14 = arith.addf %11, %13 : vector<8x128xf32>
    %cst = arith.constant 0.000000e+00 : f32
    %15 = vector.broadcast %cst : f32 to vector<8x128xf32>
    %16 = arith.maximumf %14, %15 : vector<8x128xf32>
    %17 = arith.truncf %16 : vector<8x128xf32> to vector<8x128xbf16>
    %c0_6 = arith.constant 0 : index
    %c0_7 = arith.constant 0 : index
    %18 = vector.load %arg4[%c0_6, %c0_7] : memref<128x256xbf16, #tpu.memory_space<vmem>>, vector<128x256xbf16>
    %cst_8 = arith.constant dense<0.000000e+00> : vector<8x256xf32>
    %19 = tpu.matmul %17, %18, %cst_8 {dimension_numbers = #tpu.dot_dimension_numbers<[1], [0], [0], [1], [0, 0, 1, 1], [], []>} : vector<8x128xbf16>, vector<128x256xbf16>, vector<8x256xf32> -> vector<8x256xf32>
    %c0_9 = arith.constant 0 : index
    %c0_10 = arith.constant 0 : index
    %20 = vector.load %arg5[%c0_9, %c0_10] : memref<1x256xf32, #tpu.memory_space<vmem>>, vector<1x256xf32>
    %21 = vector.broadcast %20 : vector<1x256xf32> to vector<8x256xf32>
    %22 = arith.addf %19, %21 : vector<8x256xf32>
    %cst_11 = arith.constant 0.000000e+00 : f32
    %23 = vector.broadcast %cst_11 : f32 to vector<8x256xf32>
    %24 = arith.maximumf %22, %23 : vector<8x256xf32>
    %25 = arith.truncf %24 : vector<8x256xf32> to vector<8x256xbf16>
    %c0_12 = arith.constant 0 : index
    %c0_13 = arith.constant 0 : index
    %26 = vector.load %arg6[%c0_12, %c0_13] : memref<256x8xbf16, #tpu.memory_space<vmem>>, vector<256x8xbf16>
    %cst_14 = arith.constant dense<0.000000e+00> : vector<8x8xf32>
    %27 = tpu.matmul %25, %26, %cst_14 {dimension_numbers = #tpu.dot_dimension_numbers<[1], [0], [0], [1], [0, 0, 1, 1], [], []>} : vector<8x256xbf16>, vector<256x8xbf16>, vector<8x8xf32> -> vector<8x8xf32>
    %c0_15 = arith.constant 0 : index
    %c0_16 = arith.constant 0 : index
    %28 = vector.load %arg7[%c0_15, %c0_16] : memref<1x8xf32, #tpu.memory_space<vmem>>, vector<1x8xf32>
    %29 = vector.broadcast %28 : vector<1x8xf32> to vector<8x8xf32>
    %30 = arith.addf %27, %29 : vector<8x8xf32>
    %c0_17 = arith.constant 0 : index
    %c0_18 = arith.constant 0 : index
    %31 = vector.load %arg8[%c0_17, %c0_18] : memref<8x8xf32, #tpu.memory_space<vmem>>, vector<8x8xf32>
    tpu.vector_store %arg8[%c0_17, %c0_18], %30 {strides = array<i32>} : memref<8x8xf32, #tpu.memory_space<vmem>>, vector<8x8xf32>,
    return
  }
  func.func @transform_0(%arg0: i32) -> (i32, i32) {
    %c0_i32 = arith.constant 0 : i32
    %c0_i32_0 = arith.constant 0 : i32
    return %arg0, %c0_i32 : i32, i32
  }
  func.func @transform_1(%arg0: i32) -> (i32, i32) {
    %c0_i32 = arith.constant 0 : i32
    %c0_i32_0 = arith.constant 0 : i32
    %c0_i32_1 = arith.constant 0 : i32
    return %c0_i32, %c0_i32_0 : i32, i32
  }
  func.func @transform_2(%arg0: i32) -> (i32, i32) {
    %c0_i32 = arith.constant 0 : i32
    %c0_i32_0 = arith.constant 0 : i32
    %c0_i32_1 = arith.constant 0 : i32
    return %c0_i32, %c0_i32_0 : i32, i32
  }
  func.func @transform_3(%arg0: i32) -> (i32, i32) {
    %c0_i32 = arith.constant 0 : i32
    %c0_i32_0 = arith.constant 0 : i32
    %c0_i32_1 = arith.constant 0 : i32
    return %c0_i32, %c0_i32_0 : i32, i32
  }
  func.func @transform_4(%arg0: i32) -> (i32, i32) {
    %c0_i32 = arith.constant 0 : i32
    %c0_i32_0 = arith.constant 0 : i32
    %c0_i32_1 = arith.constant 0 : i32
    return %c0_i32, %c0_i32_0 : i32, i32
  }
  func.func @transform_5(%arg0: i32) -> (i32, i32) {
    %c0_i32 = arith.constant 0 : i32
    %c0_i32_0 = arith.constant 0 : i32
    %c0_i32_1 = arith.constant 0 : i32
    return %c0_i32, %c0_i32_0 : i32, i32
  }
  func.func @transform_6(%arg0: i32) -> (i32, i32) {
    %c0_i32 = arith.constant 0 : i32
    %c0_i32_0 = arith.constant 0 : i32
    %c0_i32_1 = arith.constant 0 : i32
    return %c0_i32, %c0_i32_0 : i32, i32
  }
  func.func @transform_7(%arg0: i32) -> (i32, i32) {
    %c0_i32 = arith.constant 0 : i32
    %c0_i32_0 = arith.constant 0 : i32
    return %arg0, %c0_i32 : i32, i32
  }
}

</mosaic_0001>

<llo_original>
// kernel: tpu_custom_call.1
$region0: #{tpu_custom_call.1}
  #allocation0 [shape = 'u32[]', space=smem, size = 0x4, offset = 0x4, fixed_abs, tag = 'smem constant byte address 0x4 - core index']
  #allocation1 [shape = 'u32[144,128]{1,0:T(1,128)}', space=vmem, size = 0x12000, scoped, tag = 'internal scratch']
  %s0 = inlined_call_operand.vmem [shape: f32[8,2], index: 0, kind: input, shape index: {}]
  %s1 = inlined_call_operand.vmem [shape: f32[2,128], index: 1, kind: input, shape index: {}]
  %s2 = inlined_call_operand.vmem [shape: f32[1,128], index: 2, kind: input, shape index: {}]
  %s3 = inlined_call_operand.vmem [shape: bf16[128,256], index: 3, kind: input, shape index: {}]
  %s4 = inlined_call_operand.vmem [shape: f32[1,256], index: 4, kind: input, shape index: {}]
  %s5 = inlined_call_operand.vmem [shape: bf16[256,8], index: 5, kind: input, shape index: {}]
  %s6 = inlined_call_operand.vmem [shape: f32[1,8], index: 6, kind: input, shape index: {}]
  %s7 = inlined_call_operand.hbm [shape: f32[8,8], index: 7, kind: output, shape index: {}]
  %s8 = sld [smem:[#allocation0]]
  $region38: #{tpu_custom_call.1} parent=0
    _
  %s10 = ssub.s32 1, %s8
  %s11 = scalar_select 0, %s10, %s8
  $region1: #{tpu_custom_call.1} parent=0
    #allocation2 [shape = 'u8[4096]{0}', space=vmem, size = 0x1000, scoped, tag = 'output window, operand 0, single buffered']
    #allocation3 [shape = 's32[1]{0}', space=sflag, size = 0x4, scoped, tag = 'scoped memory for tpu_custom_call.1']
    %12 = vsyncpa [#allocation3], 0
    // Predicated region
    $region2: #{tpu_custom_call.1} parent=1 // pred_check
      _
    $region3: #{tpu_custom_call.1} parent=1 // pred_check_branch
      %14 = sbr.rel (0) target = $region5
    $region4: #{tpu_custom_call.1} parent=1 // pred_region
      _
    $region5: #{tpu_custom_call.1} parent=1 // pred_fallthru
      _
    // Predicated region
    $region6: #{tpu_custom_call.1} parent=1 // pred_check
      _
    $region7: #{tpu_custom_call.1} parent=1 // pred_check_branch
      %16 = sbr.rel (0) target = $region9
    $region8: #{tpu_custom_call.1} parent=1 // pred_region
      _
    $region9: #{tpu_custom_call.1} parent=1 // pred_fallthru
      _
    // Predicated region
    $region10: #{tpu_custom_call.1} parent=1 // pred_check
      _
    $region11: #{tpu_custom_call.1} parent=1 // pred_check_branch
      %18 = sbr.rel (0) target = $region13
    $region12: #{tpu_custom_call.1} parent=1 // pred_region
      _
    $region13: #{tpu_custom_call.1} parent=1 // pred_fallthru
      _
    // Predicated region
    $region14: #{tpu_custom_call.1} parent=1 // pred_check
      _
    $region15: #{tpu_custom_call.1} parent=1 // pred_check_branch
      %20 = sbr.rel (0) target = $region17
    $region16: #{tpu_custom_call.1} parent=1 // pred_region
      _
    $region17: #{tpu_custom_call.1} parent=1 // pred_fallthru
      _
    // Predicated region
    $region18: #{tpu_custom_call.1} parent=1 // pred_check
      _
    $region19: #{tpu_custom_call.1} parent=1 // pred_check_branch
      %22 = sbr.rel (0) target = $region21
    $region20: #{tpu_custom_call.1} parent=1 // pred_region
      _
    $region21: #{tpu_custom_call.1} parent=1 // pred_fallthru
      _
    // Predicated region
    $region22: #{tpu_custom_call.1} parent=1 // pred_check
      _
    $region23: #{tpu_custom_call.1} parent=1 // pred_check_branch
      %24 = sbr.rel (0) target = $region25
    $region24: #{tpu_custom_call.1} parent=1 // pred_region
      _
    $region25: #{tpu_custom_call.1} parent=1 // pred_fallthru
      _
    // Predicated region
    $region26: #{tpu_custom_call.1} parent=1 // pred_check
      _
    $region27: #{tpu_custom_call.1} parent=1 // pred_check_branch
      %26 = sbr.rel (0) target = $region29
    $region28: #{tpu_custom_call.1} parent=1 // pred_region
      _
    $region29: #{tpu_custom_call.1} parent=1 // pred_fallthru
      _
    %v28 = vld [vmem:[%s0] sm:$0xff]
    %v29 = vld [vmem:[%s1] sm:$0x1]
    %31 = vset.pattern.permute.xlu0 0
    %32 = vperm.xlu0 %31, %v28
    %v33 = vpop.permute.xlu0 %32
    %v35 = vlaneseq
    %v36 = vshrl.u32 %v35, 7
    %v37 = vsub.s32 0, %v36
    %v38 = vrot.slane %v29, %v37
    %v39 = vmul.f32 %v33, %v38
    %v40 = vld [vmem:[%s1 + $0x1] sm:$0x1]
    %41 = vset.pattern.permute.xlu0 1
    %42 = vperm.xlu0 %41, %v28
    %v43 = vpop.permute.xlu0 %42
    %v45 = vlaneseq
    %v46 = vshrl.u32 %v45, 7
    %v47 = vsub.s32 0, %v46
    %v48 = vrot.slane %v40, %v47
    %v49 = vmul.f32 %v43, %v48
    %v50 = vadd.f32 %v39, %v49
    %v51 = vld [vmem:[%s2] sm:$0x1]
    %v53 = vlaneseq
    %v54 = vshrl.u32 %v53, 7
    %v55 = vsub.s32 0, %v54
    %v56 = vrot.slane %v51, %v55
    %v58 = vadd.f32 %v50, %v56
    %v59 = vmax.f32 %v58, 0.0
    %v60 = vpack.c.bf16 %v59, %v59
    %v61 = vld [vmem:[%s3] sm:$0xff]
    %v62 = vld [vmem:[%s3 + $0x8] sm:$0xff]
    %v63 = vld [vmem:[%s3 + $0x10] sm:$0xff]
    %v64 = vld [vmem:[%s3 + $0x18] sm:$0xff]
    %v65 = vld [vmem:[%s3 + $0x20] sm:$0xff]
    %v66 = vld [vmem:[%s3 + $0x28] sm:$0xff]
    %v67 = vld [vmem:[%s3 + $0x30] sm:$0xff]
    %v68 = vld [vmem:[%s3 + $0x38] sm:$0xff]
    %v69 = vld [vmem:[%s3 + $0x40] sm:$0xff]
    %v70 = vld [vmem:[%s3 + $0x48] sm:$0xff]
    %v71 = vld [vmem:[%s3 + $0x50] sm:$0xff]
    %v72 = vld [vmem:[%s3 + $0x58] sm:$0xff]
    %v73 = vld [vmem:[%s3 + $0x60] sm:$0xff]
    %v74 = vld [vmem:[%s3 + $0x68] sm:$0xff]
    %v75 = vld [vmem:[%s3 + $0x70] sm:$0xff]
    %v76 = vld [vmem:[%s3 + $0x78] sm:$0xff]
    %v77 = vld [vmem:[%s4] sm:$0x3]
    %v79 = vlaneseq
    %v80 = vshrl.u32 %v79, 7
    %v81 = vsub.s32 0, %v80
    %v82 = vrot.slane %v77, %v81
    %v83 = vlaneseq
    %v84 = vshrl.u32 %v83, 7
    %v85 = vsub.s32 1, %v84
    %v86 = vrot.slane %v77, %v85
    %v105 = vunpack.c.l.b16 %v61
    %v106 = vunpack.c.h.b16 %v61
    %v107 = vunpack.c.l.b16 %v62
    %v108 = vunpack.c.h.b16 %v62
    %v109 = vunpack.c.l.b16 %v63
    %v110 = vunpack.c.h.b16 %v63
    %v111 = vunpack.c.l.b16 %v64
    %v112 = vunpack.c.h.b16 %v64
    %v113 = vunpack.c.l.b16 %v65
    %v114 = vunpack.c.h.b16 %v65
    %v115 = vunpack.c.l.b16 %v66
    %v116 = vunpack.c.h.b16 %v66
    %v117 = vunpack.c.l.b16 %v67
    %v118 = vunpack.c.h.b16 %v67
    %v119 = vunpack.c.l.b16 %v68
    %v120 = vunpack.c.h.b16 %v68
    %v121 = vunpack.c.l.b16 %v69
    %v122 = vunpack.c.h.b16 %v69
    %v123 = vunpack.c.l.b16 %v70
    %v124 = vunpack.c.h.b16 %v70
    %v125 = vunpack.c.l.b16 %v71
    %v126 = vunpack.c.h.b16 %v71
    %v127 = vunpack.c.l.b16 %v72
    %v128 = vunpack.c.h.b16 %v72
    %v129 = vunpack.c.l.b16 %v73
    %v130 = vunpack.c.h.b16 %v73
    %v131 = vunpack.c.l.b16 %v74
    %v132 = vunpack.c.h.b16 %v74
    %v133 = vunpack.c.l.b16 %v75
    %v134 = vunpack.c.h.b16 %v75
    %v135 = vunpack.c.l.b16 %v76
    %v136 = vunpack.c.h.b16 %v76
    %v137 = vpack.c.b16 %v107, %v105
    %v138 = vpack.c.b16 %v108, %v106
    %v139 = vpack.c.b16 %v111, %v109
    %v140 = vpack.c.b16 %v112, %v110
    %v141 = vpack.c.b16 %v115, %v113
    %v142 = vpack.c.b16 %v116, %v114
    %v143 = vpack.c.b16 %v119, %v117
    %v144 = vpack.c.b16 %v120, %v118
    %v145 = vpack.c.b16 %v123, %v121
    %v146 = vpack.c.b16 %v124, %v122
    %v147 = vpack.c.b16 %v127, %v125
    %v148 = vpack.c.b16 %v128, %v126
    %v149 = vpack.c.b16 %v131, %v129
    %v150 = vpack.c.b16 %v132, %v130
    %v151 = vpack.c.b16 %v135, %v133
    %v152 = vpack.c.b16 %v136, %v134
    %169 = vmatprep.subr.bf16.mxu0 %v138
    %170 = vmatpush1.bf16.msra.mxu0 %v137
    %171 = vmatprep.subr.bf16.mxu0 %v140
    %172 = vmatpush1.bf16.msra.mxu0 %v139
    %173 = vmatprep.subr.bf16.mxu0 %v142
    %174 = vmatpush1.bf16.msra.mxu0 %v141
    %175 = vmatprep.subr.bf16.mxu0 %v144
    %176 = vmatpush1.bf16.msra.mxu0 %v143
    %177 = vmatprep.subr.bf16.mxu0 %v146
    %178 = vmatpush1.bf16.msra.mxu0 %v145
    %179 = vmatprep.subr.bf16.mxu0 %v148
    %180 = vmatpush1.bf16.msra.mxu0 %v147
    %181 = vmatprep.subr.bf16.mxu0 %v150
    %182 = vmatpush1.bf16.msra.mxu0 %v149
    %183 = vmatprep.subr.bf16.mxu0 %v152
    %184 = vmatpush1.bf16.msra.mxu0 %v151
    %185 = vmatprep.subr.bf16.mxu0 0
    %186 = vmatpush1.bf16.msra.mxu0 0
    %187 = vmatprep.subr.bf16.mxu0 0
    %188 = vmatpush1.bf16.msra.mxu0 0
    %189 = vmatprep.subr.bf16.mxu0 0
    %190 = vmatpush1.bf16.msra.mxu0 0
    %191 = vmatprep.subr.bf16.mxu0 0
    %192 = vmatpush1.bf16.msra.mxu0 0
    %193 = vmatprep.subr.bf16.mxu0 0
    %194 = vmatpush1.bf16.msra.mxu0 0
    %195 = vmatprep.subr.bf16.mxu0 0
    %196 = vmatpush1.bf16.msra.mxu0 0
    %197 = vmatprep.subr.bf16.mxu0 0
    %198 = vmatpush1.bf16.msra.mxu0 0
    %199 = vmatprep.subr.bf16.mxu0 0
    %200 = vmatpush1.bf16.msra.mxu0 0
    %201 = vmatprep.mubr.bf16.mxu0 0
    %202 = vmatmul.mubr.bf16.gmra.mrb[0].mxu0 %v60
    %v203 = vpop.f32.mrb[0].mxu0
    %v204 = vadd.f32 %v82, %v203
    %v205 = vpop.f32.mrb[0].mxu0
    %v206 = vadd.f32 %v86, %v205
    %v207 = vpop.f32.mrb[0].mxu0
    %v208 = vpop.f32.mrb[0].mxu0
    %209 = vdwg.mxu0
    %v210 = vmax.f32 %v204, 0.0
    %v211 = vmax.f32 %v206, 0.0
    %v212 = vpack.c.bf16 %v210, %v210
    %v213 = vpack.c.bf16 %v211, %v211
    %v214 = vld [vmem:[%s5] sm:$0xf]
    %v215 = vld [vmem:[%s5 + $0x4] sm:$0xf]
    %v216 = vld [vmem:[%s5 + $0x8] sm:$0xf]
    %v217 = vld [vmem:[%s5 + $0xc] sm:$0xf]
    %v218 = vld [vmem:[%s5 + $0x10] sm:$0xf]
    %v219 = vld [vmem:[%s5 + $0x14] sm:$0xf]
    %v220 = vld [vmem:[%s5 + $0x18] sm:$0xf]
    %v221 = vld [vmem:[%s5 + $0x1c] sm:$0xf]
    %v222 = vld [vmem:[%s5 + $0x20] sm:$0xf]
    %v223 = vld [vmem:[%s5 + $0x24] sm:$0xf]
    %v224 = vld [vmem:[%s5 + $0x28] sm:$0xf]
    %v225 = vld [vmem:[%s5 + $0x2c] sm:$0xf]
    %v226 = vld [vmem:[%s5 + $0x30] sm:$0xf]
    %v227 = vld [vmem:[%s5 + $0x34] sm:$0xf]
    %v228 = vld [vmem:[%s5 + $0x38] sm:$0xf]
    %v229 = vld [vmem:[%s5 + $0x3c] sm:$0xf]
    %v230 = vld [vmem:[%s5 + $0x40] sm:$0xf]
    %v231 = vld [vmem:[%s5 + $0x44] sm:$0xf]
    %v232 = vld [vmem:[%s5 + $0x48] sm:$0xf]
    %v233 = vld [vmem:[%s5 + $0x4c] sm:$0xf]
    %v234 = vld [vmem:[%s5 + $0x50] sm:$0xf]
    %v235 = vld [vmem:[%s5 + $0x54] sm:$0xf]
    %v236 = vld [vmem:[%s5 + $0x58] sm:$0xf]
    %v237 = vld [vmem:[%s5 + $0x5c] sm:$0xf]
    %v238 = vld [vmem:[%s5 + $0x60] sm:$0xf]
    %v239 = vld [vmem:[%s5 + $0x64] sm:$0xf]
    %v240 = vld [vmem:[%s5 + $0x68] sm:$0xf]
    %v241 = vld [vmem:[%s5 + $0x6c] sm:$0xf]
    %v242 = vld [vmem:[%s5 + $0x70] sm:$0xf]
    %v243 = vld [vmem:[%s5 + $0x74] sm:$0xf]
    %v244 = vld [vmem:[%s5 + $0x78] sm:$0xf]
    %v245 = vld [vmem:[%s5 + $0x7c] sm:$0xf]
    %v246 = vld [vmem:[%s6] sm:$0x1]
    %v248 = vlaneseq
    %v249 = vshrl.u32 %v248, 7
    %v250 = vsub.s32 0, %v249
    %v251 = vrot.slane %v246, %v250
    %v285 = vunpack.c.l.b16 %v214
    %v286 = vunpack.c.l.b16 %v215
    %v287 = vunpack.c.l.b16 %v216
    %v288 = vunpack.c.l.b16 %v217
    %v289 = vunpack.c.l.b16 %v218
    %v290 = vunpack.c.l.b16 %v219
    %v291 = vunpack.c.l.b16 %v220
    %v292 = vunpack.c.l.b16 %v221
    %v293 = vunpack.c.l.b16 %v222
    %v294 = vunpack.c.l.b16 %v223
    %v295 = vunpack.c.l.b16 %v224
    %v296 = vunpack.c.l.b16 %v225
    %v297 = vunpack.c.l.b16 %v226
    %v298 = vunpack.c.l.b16 %v227
    %v299 = vunpack.c.l.b16 %v228
    %v300 = vunpack.c.l.b16 %v229
    %v301 = vunpack.c.l.b16 %v230
    %v302 = vunpack.c.l.b16 %v231
    %v303 = vunpack.c.l.b16 %v232
    %v304 = vunpack.c.l.b16 %v233
    %v305 = vunpack.c.l.b16 %v234
    %v306 = vunpack.c.l.b16 %v235
    %v307 = vunpack.c.l.b16 %v236
    %v308 = vunpack.c.l.b16 %v237
    %v309 = vunpack.c.l.b16 %v238
    %v310 = vunpack.c.l.b16 %v239
    %v311 = vunpack.c.l.b16 %v240
    %v312 = vunpack.c.l.b16 %v241
    %v313 = vunpack.c.l.b16 %v242
    %v314 = vunpack.c.l.b16 %v243
    %v315 = vunpack.c.l.b16 %v244
    %v316 = vunpack.c.l.b16 %v245
    %v317 = vpack.c.b16 %v286, %v285
    %v318 = vpack.c.b16 %v288, %v287
    %v319 = vpack.c.b16 %v290, %v289
    %v320 = vpack.c.b16 %v292, %v291
    %v321 = vpack.c.b16 %v294, %v293
    %v322 = vpack.c.b16 %v296, %v295
    %v323 = vpack.c.b16 %v298, %v297
    %v324 = vpack.c.b16 %v300, %v299
    %v325 = vpack.c.b16 %v302, %v301
    %v326 = vpack.c.b16 %v304, %v303
    %v327 = vpack.c.b16 %v306, %v305
    %v328 = vpack.c.b16 %v308, %v307
    %v329 = vpack.c.b16 %v310, %v309
    %v330 = vpack.c.b16 %v312, %v311
    %v331 = vpack.c.b16 %v314, %v313
    %v332 = vpack.c.b16 %v316, %v315
    %349 = vmatprep.subr.bf16.mxu0 0
    %350 = vmatpush1.bf16.msra.mxu0 %v317
    %351 = vmatprep.subr.bf16.mxu0 0
    %352 = vmatpush1.bf16.msra.mxu0 %v318
    %353 = vmatprep.subr.bf16.mxu0 0
    %354 = vmatpush1.bf16.msra.mxu0 %v319
    %355 = vmatprep.subr.bf16.mxu0 0
    %356 = vmatpush1.bf16.msra.mxu0 %v320
    %357 = vmatprep.subr.bf16.mxu0 0
    %358 = vmatpush1.bf16.msra.mxu0 %v321
    %359 = vmatprep.subr.bf16.mxu0 0
    %360 = vmatpush1.bf16.msra.mxu0 %v322
    %361 = vmatprep.subr.bf16.mxu0 0
    %362 = vmatpush1.bf16.msra.mxu0 %v323
    %363 = vmatprep.subr.bf16.mxu0 0
    %364 = vmatpush1.bf16.msra.mxu0 %v324
    %365 = vmatprep.subr.bf16.mxu0 0
    %366 = vmatpush1.bf16.msra.mxu0 %v325
    %367 = vmatprep.subr.bf16.mxu0 0
    %368 = vmatpush1.bf16.msra.mxu0 %v326
    %369 = vmatprep.subr.bf16.mxu0 0
    %370 = vmatpush1.bf16.msra.mxu0 %v327
    %371 = vmatprep.subr.bf16.mxu0 0
    %372 = vmatpush1.bf16.msra.mxu0 %v328
    %373 = vmatprep.subr.bf16.mxu0 0
    %374 = vmatpush1.bf16.msra.mxu0 %v329
    %375 = vmatprep.subr.bf16.mxu0 0
    %376 = vmatpush1.bf16.msra.mxu0 %v330
    %377 = vmatprep.subr.bf16.mxu0 0
    %378 = vmatpush1.bf16.msra.mxu0 %v331
    %379 = vmatprep.subr.bf16.mxu0 0
    %380 = vmatpush1.bf16.msra.mxu0 %v332
    %381 = vmatprep.mubr.bf16.mxu0 %v213
    %382 = vmatmul.mubr.bf16.gmra.mrb[0].mxu0 %v212
    %v383 = vpop.f32.mrb[0].mxu0
    %v384 = vadd.f32 %v251, %v383
    %v385 = vpop.f32.mrb[0].mxu0
    %v386 = vpop.f32.mrb[0].mxu0
    %v387 = vpop.f32.mrb[0].mxu0
    %388 = vdwg.mxu0
    %vm389 = vcmask 64512
    %390 = vst.msk [vmem:[#allocation2] sm:$0xff] %vm389, %v384
    // Predicated region
    $region30: #{tpu_custom_call.1} parent=1 // pred_check
      _
    $region31: #{tpu_custom_call.1} parent=1 // pred_check_branch
      %392 = sbr.rel (0) target = $region33
    $region32: #{tpu_custom_call.1} parent=1 // pred_region
      %s394 = ssub.s32 128, 128
      %395 = vsyncadd [#allocation3], %s394
      %s397 = sshll.u32 [#allocation2], 4
      %s398 = int_to_ptr.vmem [resolvable:$true] %s397
      %400 = dma.vmem_to_hbm [thread:$0]  %s398, 128, %s7, [#allocation3]
    $region33: #{tpu_custom_call.1} parent=1 // pred_fallthru
      _
    // Predicated region
    $region34: #{tpu_custom_call.1} parent=1 // pred_check
      _
    $region35: #{tpu_custom_call.1} parent=1 // pred_check_branch
      %402 = sbr.rel (0) target = $region37
    $region36: #{tpu_custom_call.1} parent=1 // pred_region
      %403 = dma.done [#allocation3], 128
    $region37: #{tpu_custom_call.1} parent=1 // pred_fallthru
      _
    %404 = vsyncpa [#allocation3], 1

</llo_original>
